<compile_context>
chip_gen: v6e
topology: v6e:2x2x1
jax: 0.10.0
libtpu: 0.0.40
codegen_flags: <defaults>
</compile_context>

<pallas_src>
import functools

import jax
import jax.numpy as jnp
from jax.experimental import pallas as pl
from jax.experimental.pallas import tpu as pltpu


def _round_up(a: int, m: int) -> int:
    return ((a + m - 1) // m) * m


def _au_encoder_kernel(x_ref, w_ref, b_ref, o_ref, *, head: int):
    # Fused [x | x@W.T + b | 0] head in one lane-dense, 128-aligned store.
    o_ref[:, :head] = (
        jnp.dot(
            x_ref[...],
            w_ref[...],
            preferred_element_type=jnp.float32,
            precision=jax.lax.Precision.HIGHEST,
        )
        + b_ref[...]
    )
    tail = o_ref.shape[1] - head
    if tail > 0:
        # Zero tail (the pad_zeros columns); start offset `head` is a multiple
        # of 128, so this is an unmasked lane-dense store as well.
        o_ref[:, head:] = jnp.zeros((o_ref.shape[0], tail), o_ref.dtype)


def make_au_encoder_params(weight, bias, *, clip_dim: int):
    """Build the augmented head weight/bias ONCE (weights are static per model).

    weight: (hidden, n_aus) as in nn.Linear(n_aus, hidden); bias: (hidden,).
    Returns w_head (n_aus, head) = [I | W.T | 0] and b_head (1, head) = [0 | b | 0]
    with head = round_up(n_aus + hidden, 128) (capped at clip_dim).
    """
    hidden_dim, n_aus = weight.shape
    assert clip_dim >= n_aus + hidden_dim
    head = min(_round_up(n_aus + hidden_dim, 128), clip_dim)
    w_head = jnp.zeros((n_aus, head), jnp.float32)
    w_head = w_head.at[:, :n_aus].set(jnp.eye(n_aus, dtype=jnp.float32))
    w_head = w_head.at[:, n_aus:n_aus + hidden_dim].set(weight.T.astype(jnp.float32))
    b_head = jnp.zeros((1, head), jnp.float32)
    b_head = b_head.at[:, n_aus:n_aus + hidden_dim].set(bias.astype(jnp.float32))
    return w_head, b_head


@functools.partial(jax.jit, static_argnames=("clip_dim", "pad_zeros", "tile_b"))
def au_encoder_forward(x, w_head, b_head, *, clip_dim, pad_zeros=True, tile_b=1024):
    """x: (B, n_aus); w_head/b_head from make_au_encoder_params.

    Returns (B, 1, clip_dim) float32 matching AUEncoder.forward.
    """
    assert pad_zeros, "non-padded variant has no well-defined (B,1,clip_dim) reshape"
    B, n_aus = x.shape
    head = w_head.shape[1]
    assert n_aus <= head <= clip_dim

    x_f32 = x.astype(jnp.float32)

    # Batch tile: portable default 1024 rows.  If B would fit in <2 tiles, cap
    # the tile at ceil(B/2) (rounded to the 8-sublane granule) so the grid has
    # >=2 steps and "parallel" semantics can shard the batch across v7x's two
    # TensorCores (no effect on single-TC v5e/v6e beyond one extra cheap step).
    if B < 2 * int(tile_b):
        tile = max(8, min(_round_up(int(tile_b), 8), _round_up(-(-B // 2), 8)))
    else:
        tile = _round_up(int(tile_b), 8)
    grid = (pl.cdiv(B, tile),)  # ragged last block handled by Pallas (no pad/slice)

    kernel = functools.partial(_au_encoder_kernel, head=head)

    cost = pl.CostEstimate(
        flops=2 * B * n_aus * head,
        transcendentals=0,
        bytes_accessed=4 * (B * clip_dim + B * n_aus + n_aus * head + head),
    )

    out = pl.pallas_call(
        kernel,
        out_shape=jax.ShapeDtypeStruct((B, clip_dim), jnp.float32),
        grid=grid,
        in_specs=[
            pl.BlockSpec((tile, n_aus), lambda i: (i, 0)),
            pl.BlockSpec((n_aus, head), lambda i: (0, 0)),   # VMEM-resident constant
            pl.BlockSpec((1, head), lambda i: (0, 0)),        # VMEM-resident constant
        ],
        out_specs=pl.BlockSpec((tile, clip_dim), lambda i: (i, 0)),
        compiler_params=pltpu.CompilerParams(
            dimension_semantics=("parallel",),
        ),
        cost_estimate=cost,
    )(x_f32, w_head, b_head)

    return out.reshape(-1, 1, clip_dim)


if __name__ == "__main__":
    # Small shapes consistent with the module defaults.
    B = 8
    n_aus = 12
    hidden_dim = 64
    clip_dim = 1024

    key = jax.random.PRNGKey(0)
    kx, kw, kb = jax.random.split(key, 3)

    x = jax.random.normal(kx, (B, n_aus), dtype=jnp.float32)
    # Deterministic synthetic Linear params (same shapes as nn.Linear(n_aus, hidden)).
    weight = jax.random.normal(kw, (hidden_dim, n_aus), dtype=jnp.float32) * 0.1
    bias = jax.random.normal(kb, (hidden_dim,), dtype=jnp.float32) * 0.1

    # Augmented params built once (module-init time), not per forward call.
    w_head, b_head = make_au_encoder_params(weight, bias, clip_dim=clip_dim)

    out = au_encoder_forward(x, w_head, b_head, clip_dim=clip_dim, pad_zeros=True)
    out = jax.block_until_ready(out)

    # Pure-JAX reference for correctness (full-precision matmul to match kernel).
    h_ref = jnp.dot(x, weight.T, precision=jax.lax.Precision.HIGHEST) + bias
    pad = jnp.zeros((B, clip_dim - n_aus - hidden_dim), jnp.float32)
    ref = jnp.concatenate([x, h_ref, pad], axis=1).reshape(-1, 1, clip_dim)

    assert out.shape == (B, 1, clip_dim), out.shape
    assert jnp.allclose(out, ref, atol=1e-5, rtol=1e-5), "mismatch vs reference"

    print("KERNEL_OK")
</pallas_src>

<mosaic_0001>
module attributes {stable_mosaic.version = 11 : i64} {
  func.func @_au_encoder_kernel(%arg0: i32, %arg1: memref<8x12xf32, #tpu.memory_space<vmem>>, %arg2: memref<12x128xf32, #tpu.memory_space<vmem>>, %arg3: memref<1x128xf32, #tpu.memory_space<vmem>>, %arg4: memref<8x1024xf32, #tpu.memory_space<vmem>>) attributes {dimension_semantics = [#tpu.dimension_semantics<parallel>], iteration_bounds = array<i64: 1>, scalar_prefetch = 0 : i64, scratch_operands = 0 : i64, tpu.core_type = #tpu.core_type<tc>, window_params = [{transform_indices = @transform_0, window_bounds = array<i64: 8, 12>}, {pipeline_mode = #tpu.pipeline_mode<synchronous>, transform_indices = @transform_1, window_bounds = array<i64: 12, 128>}, {pipeline_mode = #tpu.pipeline_mode<synchronous>, transform_indices = @transform_2, window_bounds = array<i64: 1, 128>}, {transform_indices = @transform_3, window_bounds = array<i64: 8, 1024>}]} {
    %c0 = arith.constant 0 : index
    %c0_0 = arith.constant 0 : index
    %0 = vector.load %arg1[%c0, %c0_0] : memref<8x12xf32, #tpu.memory_space<vmem>>, vector<8x12xf32>
    %c0_1 = arith.constant 0 : index
    %c0_2 = arith.constant 0 : index
    %1 = vector.load %arg2[%c0_1, %c0_2] : memref<12x128xf32, #tpu.memory_space<vmem>>, vector<12x128xf32>
    %cst = arith.constant dense<0.000000e+00> : vector<8x128xf32>
    %2 = tpu.matmul %0, %1, %cst {dimension_numbers = #tpu.dot_dimension_numbers<[1], [0], [0], [1], [0, 0, 1, 1], [], []>, precision = #tpu.contract_precision<fp32>} : vector<8x12xf32>, vector<12x128xf32>, vector<8x128xf32> -> vector<8x128xf32>
    %c0_3 = arith.constant 0 : index
    %c0_4 = arith.constant 0 : index
    %3 = vector.load %arg3[%c0_3, %c0_4] : memref<1x128xf32, #tpu.memory_space<vmem>>, vector<1x128xf32>
    %4 = vector.broadcast %3 : vector<1x128xf32> to vector<8x128xf32>
    %5 = arith.addf %2, %4 : vector<8x128xf32>
    %c0_5 = arith.constant 0 : index
    %c0_6 = arith.constant 0 : index
    %6 = vector.load %arg4[%c0_5, %c0_6] : memref<8x1024xf32, #tpu.memory_space<vmem>>, vector<8x128xf32>
    tpu.vector_store %arg4[%c0_5, %c0_6], %5 {strides = array<i32>} : memref<8x1024xf32, #tpu.memory_space<vmem>>, vector<8x128xf32>,
    %cst_7 = arith.constant 0.000000e+00 : f32
    %7 = vector.broadcast %cst_7 : f32 to vector<8x896xf32>
    %c0_8 = arith.constant 0 : index
    %c128 = arith.constant 128 : index
    %8 = vector.load %arg4[%c0_8, %c128] : memref<8x1024xf32, #tpu.memory_space<vmem>>, vector<8x896xf32>
    tpu.vector_store %arg4[%c0_8, %c128], %7 {strides = array<i32>} : memref<8x1024xf32, #tpu.memory_space<vmem>>, vector<8x896xf32>,
    return
  }
  func.func @transform_0(%arg0: i32) -> (i32, i32) {
    %c0_i32 = arith.constant 0 : i32
    %c0_i32_0 = arith.constant 0 : i32
    return %arg0, %c0_i32 : i32, i32
  }
  func.func @transform_1(%arg0: i32) -> (i32, i32) {
    %c0_i32 = arith.constant 0 : i32
    %c0_i32_0 = arith.constant 0 : i32
    %c0_i32_1 = arith.constant 0 : i32
    return %c0_i32, %c0_i32_0 : i32, i32
  }
  func.func @transform_2(%arg0: i32) -> (i32, i32) {
    %c0_i32 = arith.constant 0 : i32
    %c0_i32_0 = arith.constant 0 : i32
    %c0_i32_1 = arith.constant 0 : i32
    return %c0_i32, %c0_i32_0 : i32, i32
  }
  func.func @transform_3(%arg0: i32) -> (i32, i32) {
    %c0_i32 = arith.constant 0 : i32
    %c0_i32_0 = arith.constant 0 : i32
    return %arg0, %c0_i32 : i32, i32
  }
}

</mosaic_0001>

<llo_original>
// kernel: au_encoder_forward.1
$region0: #{au_encoder_forward.1}
  #allocation0 [shape = 'u32[]', space=smem, size = 0x4, offset = 0x4, fixed_abs, tag = 'smem constant byte address 0x4 - core index']
  #allocation1 [shape = 'u32[144,128]{1,0:T(1,128)}', space=vmem, size = 0x12000, scoped, tag = 'internal scratch']
  %s0 = inlined_call_operand.hbm [shape: f32[8,12], index: 0, kind: input, shape index: {}]
  %s1 = inlined_call_operand.hbm [shape: f32[12,128], index: 1, kind: input, shape index: {}]
  %s2 = inlined_call_operand.vmem [shape: f32[1,128], index: 2, kind: input, shape index: {}]
  %s3 = inlined_call_operand.vmem [shape: f32[8,1024], index: 3, kind: output, shape index: {}]
  %s4 = sld [smem:[#allocation0]]
  $region30: #{au_encoder_forward.1} parent=0
    _
  %s6 = ssub.s32 1, %s4
  %s7 = scalar_select 0, %s6, %s4
  $region1: #{au_encoder_forward.1} parent=0
    #allocation2 [shape = 'u8[4096]{0}', space=vmem, size = 0x1000, scoped, tag = 'input window, operand 0, single buffered']
    #allocation3 [shape = 's32[1]{0}', space=sflag, size = 0x4, scoped, tag = 'scoped memory for au_encoder_forward.1']
    #allocation4 [shape = 'u8[8192]{0}', space=vmem, size = 0x2000, scoped, tag = 'input window, operand 1, single buffered']
    #allocation5 [shape = 's32[1]{0}', space=sflag, size = 0x4, scoped, tag = 'scoped memory for au_encoder_forward.1']
    %8 = vsyncpa [#allocation3], 0
    %9 = vsyncpa [#allocation5], 0
    // Predicated region
    $region2: #{au_encoder_forward.1} parent=1 // pred_check
      _
    $region3: #{au_encoder_forward.1} parent=1 // pred_check_branch
      %11 = sbr.rel (0) target = $region5
    $region4: #{au_encoder_forward.1} parent=1 // pred_region
      %s13 = ssub.s32 128, 128
      %14 = vsyncadd [#allocation3], %s13
      %s16 = sshll.u32 [#allocation2], 4
      %s17 = int_to_ptr.vmem [resolvable:$true] %s16
      %19 = dma.hbm_to_vmem [thread:$0]  %s0, 128, %s17, [#allocation3]
    $region5: #{au_encoder_forward.1} parent=1 // pred_fallthru
      _
    // Predicated region
    $region6: #{au_encoder_forward.1} parent=1 // pred_check
      _
    $region7: #{au_encoder_forward.1} parent=1 // pred_check_branch
      %21 = sbr.rel (0) target = $region9
    $region8: #{au_encoder_forward.1} parent=1 // pred_region
      %s23 = ssub.s32 256, 256
      %24 = vsyncadd [#allocation5], %s23
      %s25 = sshll.u32 [#allocation4], 4
      %s26 = int_to_ptr.vmem [resolvable:$true] %s25
      %31 = dma.hbm_to_vmem [thread:$0]  %s1, 256, %s26, [#allocation5], 128, 128, 8
    $region9: #{au_encoder_forward.1} parent=1 // pred_fallthru
      _
    // Predicated region
    $region10: #{au_encoder_forward.1} parent=1 // pred_check
      _
    $region11: #{au_encoder_forward.1} parent=1 // pred_check_branch
      %33 = sbr.rel (0) target = $region13
    $region12: #{au_encoder_forward.1} parent=1 // pred_region
      _
    $region13: #{au_encoder_forward.1} parent=1 // pred_fallthru
      _
    // Predicated region
    $region14: #{au_encoder_forward.1} parent=1 // pred_check
      _
    $region15: #{au_encoder_forward.1} parent=1 // pred_check_branch
      %35 = sbr.rel (0) target = $region17
    $region16: #{au_encoder_forward.1} parent=1 // pred_region
      %36 = dma.done [#allocation3], 128
    $region17: #{au_encoder_forward.1} parent=1 // pred_fallthru
      _
    // Predicated region
    $region18: #{au_encoder_forward.1} parent=1 // pred_check
      _
    $region19: #{au_encoder_forward.1} parent=1 // pred_check_branch
      %38 = sbr.rel (0) target = $region21
    $region20: #{au_encoder_forward.1} parent=1 // pred_region
      %39 = dma.done [#allocation5], 256
    $region21: #{au_encoder_forward.1} parent=1 // pred_fallthru
      _
    %v40 = vld [vmem:[#allocation2] sm:$0xff]
    %v41 = vld [vmem:[#allocation4] sm:$0xff]
    %v42 = vld [vmem:[#allocation4 + $0x8] sm:$0xf]
    %v43 = vld [vmem:[%s2] sm:$0x1]
    %v45 = vlaneseq
    %v46 = vshrl.u32 %v45, 7
    %v47 = vsub.s32 0, %v46
    %v48 = vrot.slane %v43, %v47
    %vm50 = vcmask 97280
    %v52 = vsel %vm50, %v40, 0
    %vm54 = vcmask 1043456
    %v56 = vsel %vm54, %v42, 0
    %58 = vmatprep.subr.mxu0 0.0
    %59 = vmatpush1.msra.mxu0 0.0
    %60 = vmatprep.subr.mxu0 0.0
    %61 = vmatpush1.msra.mxu0 0.0
    %62 = vmatprep.subr.mxu0 0.0
    %63 = vmatpush1.msra.mxu0 0.0
    %64 = vmatprep.subr.mxu0 0.0
    %65 = vmatpush1.msra.mxu0 0.0
    %66 = vmatprep.subr.mxu0 0.0
    %67 = vmatpush1.msra.mxu0 0.0
    %68 = vmatprep.subr.mxu0 0.0
    %69 = vmatpush1.msra.mxu0 0.0
    %70 = vmatprep.subr.mxu0 0.0
    %71 = vmatpush1.msra.mxu0 0.0
    %72 = vmatprep.subr.mxu0 0.0
    %73 = vmatpush1.msra.mxu0 0.0
    %74 = vmatprep.subr.mxu0 0.0
    %75 = vmatpush1.msra.mxu0 0.0
    %76 = vmatprep.subr.mxu0 0.0
    %77 = vmatpush1.msra.mxu0 0.0
    %78 = vmatprep.subr.mxu0 0.0
    %79 = vmatpush1.msra.mxu0 0.0
    %80 = vmatprep.subr.mxu0 0.0
    %81 = vmatpush1.msra.mxu0 0.0
    %82 = vmatprep.subr.mxu0 0.0
    %83 = vmatpush1.msra.mxu0 0.0
    %84 = vmatprep.subr.mxu0 0.0
    %85 = vmatpush1.msra.mxu0 0.0
    %86 = vmatprep.subr.mxu0 0.0
    %v87 = vand.u32 %v56, 4294901760
    %88 = vmatpush1.msra.mxu0 %v87
    %89 = vmatprep.subr.mxu0 0.0
    %v90 = vand.u32 %v41, 4294901760
    %91 = vmatpush1.msra.mxu0 %v90
    %92 = vmatprep.subr.mxu0 0.0
    %93 = vmatpush2.msra.mxu0 0.0
    %94 = vmatprep.subr.mxu0 0.0
    %95 = vmatpush2.msra.mxu0 0.0
    %96 = vmatprep.subr.mxu0 0.0
    %97 = vmatpush2.msra.mxu0 0.0
    %98 = vmatprep.subr.mxu0 0.0
    %99 = vmatpush2.msra.mxu0 0.0
    %100 = vmatprep.subr.mxu0 0.0
    %101 = vmatpush2.msra.mxu0 0.0
    %102 = vmatprep.subr.mxu0 0.0
    %103 = vmatpush2.msra.mxu0 0.0
    %104 = vmatprep.subr.mxu0 0.0
    %105 = vmatpush2.msra.mxu0 0.0
    %106 = vmatprep.subr.mxu0 0.0
    %107 = vmatpush2.msra.mxu0 0.0
    %108 = vmatprep.subr.mxu0 0.0
    %109 = vmatpush2.msra.mxu0 0.0
    %110 = vmatprep.subr.mxu0 0.0
    %111 = vmatpush2.msra.mxu0 0.0
    %112 = vmatprep.subr.mxu0 0.0
    %113 = vmatpush2.msra.mxu0 0.0
    %114 = vmatprep.subr.mxu0 0.0
    %115 = vmatpush2.msra.mxu0 0.0
    %116 = vmatprep.subr.mxu0 0.0
    %117 = vmatpush2.msra.mxu0 0.0
    %118 = vmatprep.subr.mxu0 0.0
    %119 = vmatpush2.msra.mxu0 0.0
    %120 = vmatprep.subr.mxu0 0.0
    %121 = vmatpush2.msra.mxu0 0.0
    %122 = vmatprep.subr.mxu0 0.0
    %123 = vmatpush2.msra.mxu0 0.0
    %124 = vmatprep.mubr.f32.mxu0 0.0
    %v125 = vand.u32 %v52, 4294901760
    %v126 = vsub.f32 %v52, %v125
    %v127 = vand.u32 %v126, 4294901760
    %v128 = vsub.f32 %v126, %v127
    %v129 = vand.u32 %v128, 4294901760
    %130 = vmatmul.mubr.f32.gmra.mxu0 %v129
    %v131 = vpop.f32.mrf.mxu0
    %v132 = vadd.f32 %v48, %v131
    %v133 = vpop.f32.mrf.mxu0
    %134 = vdwg.mxu0
    %135 = vmatprep.subr.mxu0 0.0
    %136 = vmatpush1.msra.mxu0 0.0
    %137 = vmatprep.subr.mxu0 0.0
    %138 = vmatpush1.msra.mxu0 0.0
    %139 = vmatprep.subr.mxu0 0.0
    %140 = vmatpush1.msra.mxu0 0.0
    %141 = vmatprep.subr.mxu0 0.0
    %142 = vmatpush1.msra.mxu0 0.0
    %143 = vmatprep.subr.mxu0 0.0
    %144 = vmatpush1.msra.mxu0 0.0
    %145 = vmatprep.subr.mxu0 0.0
    %146 = vmatpush1.msra.mxu0 0.0
    %147 = vmatprep.subr.mxu0 0.0
    %148 = vmatpush1.msra.mxu0 0.0
    %149 = vmatprep.subr.mxu0 0.0
    %150 = vmatpush1.msra.mxu0 0.0
    %151 = vmatprep.subr.mxu0 0.0
    %152 = vmatpush1.msra.mxu0 0.0
    %153 = vmatprep.subr.mxu0 0.0
    %154 = vmatpush1.msra.mxu0 0.0
    %155 = vmatprep.subr.mxu0 0.0
    %156 = vmatpush1.msra.mxu0 0.0
    %157 = vmatprep.subr.mxu0 0.0
    %158 = vmatpush1.msra.mxu0 0.0
    %159 = vmatprep.subr.mxu0 0.0
    %160 = vmatpush1.msra.mxu0 0.0
    %161 = vmatprep.subr.mxu0 0.0
    %162 = vmatpush1.msra.mxu0 0.0
    %163 = vmatprep.subr.mxu0 0.0
    %v164 = vand.u32 %v56, 4294901760
    %v165 = vsub.f32 %v56, %v164
    %v166 = vand.u32 %v165, 4294901760
    %v167 = vsub.f32 %v165, %v166
    %v168 = vand.u32 %v167, 4294901760
    %169 = vmatpush1.msra.mxu0 %v168
    %170 = vmatprep.subr.mxu0 0.0
    %v171 = vand.u32 %v41, 4294901760
    %v172 = vsub.f32 %v41, %v171
    %v173 = vand.u32 %v172, 4294901760
    %v174 = vsub.f32 %v172, %v173
    %v175 = vand.u32 %v174, 4294901760
    %176 = vmatpush1.msra.mxu0 %v175
    %177 = vmatprep.subr.mxu0 0.0
    %178 = vmatpush2.msra.mxu0 0.0
    %179 = vmatprep.subr.mxu0 0.0
    %180 = vmatpush2.msra.mxu0 0.0
    %181 = vmatprep.subr.mxu0 0.0
    %182 = vmatpush2.msra.mxu0 0.0
    %183 = vmatprep.subr.mxu0 0.0
    %184 = vmatpush2.msra.mxu0 0.0
    %185 = vmatprep.subr.mxu0 0.0
    %186 = vmatpush2.msra.mxu0 0.0
    %187 = vmatprep.subr.mxu0 0.0
    %188 = vmatpush2.msra.mxu0 0.0
    %189 = vmatprep.subr.mxu0 0.0
    %190 = vmatpush2.msra.mxu0 0.0
    %191 = vmatprep.subr.mxu0 0.0
    %192 = vmatpush2.msra.mxu0 0.0
    %193 = vmatprep.subr.mxu0 0.0
    %194 = vmatpush2.msra.mxu0 0.0
    %195 = vmatprep.subr.mxu0 0.0
    %196 = vmatpush2.msra.mxu0 0.0
    %197 = vmatprep.subr.mxu0 0.0
    %198 = vmatpush2.msra.mxu0 0.0
    %199 = vmatprep.subr.mxu0 0.0
    %200 = vmatpush2.msra.mxu0 0.0
    %201 = vmatprep.subr.mxu0 0.0
    %202 = vmatpush2.msra.mxu0 0.0
    %203 = vmatprep.subr.mxu0 0.0
    %204 = vmatpush2.msra.mxu0 0.0
    %205 = vmatprep.subr.mxu0 0.0
    %206 = vmatpush2.msra.mxu0 0.0
    %207 = vmatprep.subr.mxu0 0.0
    %208 = vmatpush2.msra.mxu0 0.0
    %209 = vmatprep.mubr.f32.mxu0 0.0
    %v210 = vand.u32 %v52, 4294901760
    %211 = vmatmul.mubr.f32.gmra.mxu0 %v210
    %v212 = vpop.f32.mrf.mxu0
    %v213 = vadd.f32 %v132, %v212
    %v214 = vpop.f32.mrf.mxu0
    %215 = vdwg.mxu0
    %216 = vmatprep.subr.mxu0 0.0
    %217 = vmatpush1.msra.mxu0 0.0
    %218 = vmatprep.subr.mxu0 0.0
    %219 = vmatpush1.msra.mxu0 0.0
    %220 = vmatprep.subr.mxu0 0.0
    %221 = vmatpush1.msra.mxu0 0.0
    %222 = vmatprep.subr.mxu0 0.0
    %223 = vmatpush1.msra.mxu0 0.0
    %224 = vmatprep.subr.mxu0 0.0
    %225 = vmatpush1.msra.mxu0 0.0
    %226 = vmatprep.subr.mxu0 0.0
    %227 = vmatpush1.msra.mxu0 0.0
    %228 = vmatprep.subr.mxu0 0.0
    %229 = vmatpush1.msra.mxu0 0.0
    %230 = vmatprep.subr.mxu0 0.0
    %231 = vmatpush1.msra.mxu0 0.0
    %232 = vmatprep.subr.mxu0 0.0
    %233 = vmatpush1.msra.mxu0 0.0
    %234 = vmatprep.subr.mxu0 0.0
    %235 = vmatpush1.msra.mxu0 0.0
    %236 = vmatprep.subr.mxu0 0.0
    %237 = vmatpush1.msra.mxu0 0.0
    %238 = vmatprep.subr.mxu0 0.0
    %239 = vmatpush1.msra.mxu0 0.0
    %240 = vmatprep.subr.mxu0 0.0
    %241 = vmatpush1.msra.mxu0 0.0
    %242 = vmatprep.subr.mxu0 0.0
    %243 = vmatpush1.msra.mxu0 0.0
    %244 = vmatprep.subr.mxu0 0.0
    %v245 = vand.u32 %v56, 4294901760
    %v246 = vsub.f32 %v56, %v245
    %247 = vmatpush1.msra.mxu0 %v246
    %248 = vmatprep.subr.mxu0 0.0
    %v249 = vand.u32 %v41, 4294901760
    %v250 = vsub.f32 %v41, %v249
    %251 = vmatpush1.msra.mxu0 %v250
    %252 = vmatprep.subr.mxu0 0.0
    %253 = vmatpush2.msra.mxu0 0.0
    %254 = vmatprep.subr.mxu0 0.0
    %255 = vmatpush2.msra.mxu0 0.0
    %256 = vmatprep.subr.mxu0 0.0
    %257 = vmatpush2.msra.mxu0 0.0
    %258 = vmatprep.subr.mxu0 0.0
    %259 = vmatpush2.msra.mxu0 0.0
    %260 = vmatprep.subr.mxu0 0.0
    %261 = vmatpush2.msra.mxu0 0.0
    %262 = vmatprep.subr.mxu0 0.0
    %263 = vmatpush2.msra.mxu0 0.0
    %264 = vmatprep.subr.mxu0 0.0
    %265 = vmatpush2.msra.mxu0 0.0
    %266 = vmatprep.subr.mxu0 0.0
    %267 = vmatpush2.msra.mxu0 0.0
    %268 = vmatprep.subr.mxu0 0.0
    %269 = vmatpush2.msra.mxu0 0.0
    %270 = vmatprep.subr.mxu0 0.0
    %271 = vmatpush2.msra.mxu0 0.0
    %272 = vmatprep.subr.mxu0 0.0
    %273 = vmatpush2.msra.mxu0 0.0
    %274 = vmatprep.subr.mxu0 0.0
    %275 = vmatpush2.msra.mxu0 0.0
    %276 = vmatprep.subr.mxu0 0.0
    %277 = vmatpush2.msra.mxu0 0.0
    %278 = vmatprep.subr.mxu0 0.0
    %279 = vmatpush2.msra.mxu0 0.0
    %280 = vmatprep.subr.mxu0 0.0
    %281 = vmatpush2.msra.mxu0 0.0
    %282 = vmatprep.subr.mxu0 0.0
    %283 = vmatpush2.msra.mxu0 0.0
    %284 = vmatprep.mubr.f32.mxu0 0.0
    %v285 = vand.u32 %v52, 4294901760
    %v286 = vsub.f32 %v52, %v285
    %287 = vmatmul.mubr.f32.gmra.mxu0 %v286
    %v288 = vpop.f32.mrf.mxu0
    %v289 = vadd.f32 %v213, %v288
    %v290 = vpop.f32.mrf.mxu0
    %291 = vdwg.mxu0
    %292 = vmatprep.subr.mxu0 0.0
    %293 = vmatpush1.msra.mxu0 0.0
    %294 = vmatprep.subr.mxu0 0.0
    %295 = vmatpush1.msra.mxu0 0.0
    %296 = vmatprep.subr.mxu0 0.0
    %297 = vmatpush1.msra.mxu0 0.0
    %298 = vmatprep.subr.mxu0 0.0
    %299 = vmatpush1.msra.mxu0 0.0
    %300 = vmatprep.subr.mxu0 0.0
    %301 = vmatpush1.msra.mxu0 0.0
    %302 = vmatprep.subr.mxu0 0.0
    %303 = vmatpush1.msra.mxu0 0.0
    %304 = vmatprep.subr.mxu0 0.0
    %305 = vmatpush1.msra.mxu0 0.0
    %306 = vmatprep.subr.mxu0 0.0
    %307 = vmatpush1.msra.mxu0 0.0
    %308 = vmatprep.subr.mxu0 0.0
    %309 = vmatpush1.msra.mxu0 0.0
    %310 = vmatprep.subr.mxu0 0.0
    %311 = vmatpush1.msra.mxu0 0.0
    %312 = vmatprep.subr.mxu0 0.0
    %313 = vmatpush1.msra.mxu0 0.0
    %314 = vmatprep.subr.mxu0 0.0
    %315 = vmatpush1.msra.mxu0 0.0
    %316 = vmatprep.subr.mxu0 0.0
    %317 = vmatpush1.msra.mxu0 0.0
    %318 = vmatprep.subr.mxu0 0.0
    %319 = vmatpush1.msra.mxu0 0.0
    %320 = vmatprep.subr.mxu0 0.0
    %v321 = vand.u32 %v56, 4294901760
    %322 = vmatpush1.msra.mxu0 %v321
    %323 = vmatprep.subr.mxu0 0.0
    %v324 = vand.u32 %v41, 4294901760
    %325 = vmatpush1.msra.mxu0 %v324
    %326 = vmatprep.subr.mxu0 0.0
    %327 = vmatpush2.msra.mxu0 0.0
    %328 = vmatprep.subr.mxu0 0.0
    %329 = vmatpush2.msra.mxu0 0.0
    %330 = vmatprep.subr.mxu0 0.0
    %331 = vmatpush2.msra.mxu0 0.0
    %332 = vmatprep.subr.mxu0 0.0
    %333 = vmatpush2.msra.mxu0 0.0
    %334 = vmatprep.subr.mxu0 0.0
    %335 = vmatpush2.msra.mxu0 0.0
    %336 = vmatprep.subr.mxu0 0.0
    %337 = vmatpush2.msra.mxu0 0.0
    %338 = vmatprep.subr.mxu0 0.0
    %339 = vmatpush2.msra.mxu0 0.0
    %340 = vmatprep.subr.mxu0 0.0
    %341 = vmatpush2.msra.mxu0 0.0
    %342 = vmatprep.subr.mxu0 0.0
    %343 = vmatpush2.msra.mxu0 0.0
    %344 = vmatprep.subr.mxu0 0.0
    %345 = vmatpush2.msra.mxu0 0.0
    %346 = vmatprep.subr.mxu0 0.0
    %347 = vmatpush2.msra.mxu0 0.0
    %348 = vmatprep.subr.mxu0 0.0
    %349 = vmatpush2.msra.mxu0 0.0
    %350 = vmatprep.subr.mxu0 0.0
    %351 = vmatpush2.msra.mxu0 0.0
    %352 = vmatprep.subr.mxu0 0.0
    %353 = vmatpush2.msra.mxu0 0.0
    %354 = vmatprep.subr.mxu0 0.0
    %355 = vmatpush2.msra.mxu0 0.0
    %356 = vmatprep.subr.mxu0 0.0
    %357 = vmatpush2.msra.mxu0 0.0
    %358 = vmatprep.mubr.f32.mxu0 0.0
    %v359 = vand.u32 %v52, 4294901760
    %v360 = vsub.f32 %v52, %v359
    %v361 = vand.u32 %v360, 4294901760
    %362 = vmatmul.mubr.f32.gmra.mxu0 %v361
    %v363 = vpop.f32.mrf.mxu0
    %v364 = vadd.f32 %v289, %v363
    %v365 = vpop.f32.mrf.mxu0
    %366 = vdwg.mxu0
    %367 = vmatprep.subr.mxu0 0.0
    %368 = vmatpush1.msra.mxu0 0.0
    %369 = vmatprep.subr.mxu0 0.0
    %370 = vmatpush1.msra.mxu0 0.0
    %371 = vmatprep.subr.mxu0 0.0
    %372 = vmatpush1.msra.mxu0 0.0
    %373 = vmatprep.subr.mxu0 0.0
    %374 = vmatpush1.msra.mxu0 0.0
    %375 = vmatprep.subr.mxu0 0.0
    %376 = vmatpush1.msra.mxu0 0.0
    %377 = vmatprep.subr.mxu0 0.0
    %378 = vmatpush1.msra.mxu0 0.0
    %379 = vmatprep.subr.mxu0 0.0
    %380 = vmatpush1.msra.mxu0 0.0
    %381 = vmatprep.subr.mxu0 0.0
    %382 = vmatpush1.msra.mxu0 0.0
    %383 = vmatprep.subr.mxu0 0.0
    %384 = vmatpush1.msra.mxu0 0.0
    %385 = vmatprep.subr.mxu0 0.0
    %386 = vmatpush1.msra.mxu0 0.0
    %387 = vmatprep.subr.mxu0 0.0
    %388 = vmatpush1.msra.mxu0 0.0
    %389 = vmatprep.subr.mxu0 0.0
    %390 = vmatpush1.msra.mxu0 0.0
    %391 = vmatprep.subr.mxu0 0.0
    %392 = vmatpush1.msra.mxu0 0.0
    %393 = vmatprep.subr.mxu0 0.0
    %394 = vmatpush1.msra.mxu0 0.0
    %395 = vmatprep.subr.mxu0 0.0
    %v396 = vand.u32 %v56, 4294901760
    %v397 = vsub.f32 %v56, %v396
    %v398 = vand.u32 %v397, 4294901760
    %399 = vmatpush1.msra.mxu0 %v398
    %400 = vmatprep.subr.mxu0 0.0
    %v401 = vand.u32 %v41, 4294901760
    %v402 = vsub.f32 %v41, %v401
    %v403 = vand.u32 %v402, 4294901760
    %404 = vmatpush1.msra.mxu0 %v403
    %405 = vmatprep.subr.mxu0 0.0
    %406 = vmatpush2.msra.mxu0 0.0
    %407 = vmatprep.subr.mxu0 0.0
    %408 = vmatpush2.msra.mxu0 0.0
    %409 = vmatprep.subr.mxu0 0.0
    %410 = vmatpush2.msra.mxu0 0.0
    %411 = vmatprep.subr.mxu0 0.0
    %412 = vmatpush2.msra.mxu0 0.0
    %413 = vmatprep.subr.mxu0 0.0
    %414 = vmatpush2.msra.mxu0 0.0
    %415 = vmatprep.subr.mxu0 0.0
    %416 = vmatpush2.msra.mxu0 0.0
    %417 = vmatprep.subr.mxu0 0.0
    %418 = vmatpush2.msra.mxu0 0.0
    %419 = vmatprep.subr.mxu0 0.0
    %420 = vmatpush2.msra.mxu0 0.0
    %421 = vmatprep.subr.mxu0 0.0
    %422 = vmatpush2.msra.mxu0 0.0
    %423 = vmatprep.subr.mxu0 0.0
    %424 = vmatpush2.msra.mxu0 0.0
    %425 = vmatprep.subr.mxu0 0.0
    %426 = vmatpush2.msra.mxu0 0.0
    %427 = vmatprep.subr.mxu0 0.0
    %428 = vmatpush2.msra.mxu0 0.0
    %429 = vmatprep.subr.mxu0 0.0
    %430 = vmatpush2.msra.mxu0 0.0
    %431 = vmatprep.subr.mxu0 0.0
    %432 = vmatpush2.msra.mxu0 0.0
    %433 = vmatprep.subr.mxu0 0.0
    %434 = vmatpush2.msra.mxu0 0.0
    %435 = vmatprep.subr.mxu0 0.0
    %436 = vmatpush2.msra.mxu0 0.0
    %437 = vmatprep.mubr.f32.mxu0 0.0
    %v438 = vand.u32 %v52, 4294901760
    %439 = vmatmul.mubr.f32.gmra.mxu0 %v438
    %v440 = vpop.f32.mrf.mxu0
    %v441 = vadd.f32 %v364, %v440
    %v442 = vpop.f32.mrf.mxu0
    %443 = vdwg.mxu0
    %444 = vmatprep.subr.mxu0 0.0
    %445 = vmatpush1.msra.mxu0 0.0
    %446 = vmatprep.subr.mxu0 0.0
    %447 = vmatpush1.msra.mxu0 0.0
    %448 = vmatprep.subr.mxu0 0.0
    %449 = vmatpush1.msra.mxu0 0.0
    %450 = vmatprep.subr.mxu0 0.0
    %451 = vmatpush1.msra.mxu0 0.0
    %452 = vmatprep.subr.mxu0 0.0
    %453 = vmatpush1.msra.mxu0 0.0
    %454 = vmatprep.subr.mxu0 0.0
    %455 = vmatpush1.msra.mxu0 0.0
    %456 = vmatprep.subr.mxu0 0.0
    %457 = vmatpush1.msra.mxu0 0.0
    %458 = vmatprep.subr.mxu0 0.0
    %459 = vmatpush1.msra.mxu0 0.0
    %460 = vmatprep.subr.mxu0 0.0
    %461 = vmatpush1.msra.mxu0 0.0
    %462 = vmatprep.subr.mxu0 0.0
    %463 = vmatpush1.msra.mxu0 0.0
    %464 = vmatprep.subr.mxu0 0.0
    %465 = vmatpush1.msra.mxu0 0.0
    %466 = vmatprep.subr.mxu0 0.0
    %467 = vmatpush1.msra.mxu0 0.0
    %468 = vmatprep.subr.mxu0 0.0
    %469 = vmatpush1.msra.mxu0 0.0
    %470 = vmatprep.subr.mxu0 0.0
    %471 = vmatpush1.msra.mxu0 0.0
    %472 = vmatprep.subr.mxu0 0.0
    %v473 = vand.u32 %v56, 4294901760
    %474 = vmatpush1.msra.mxu0 %v473
    %475 = vmatprep.subr.mxu0 0.0
    %v476 = vand.u32 %v41, 4294901760
    %477 = vmatpush1.msra.mxu0 %v476
    %478 = vmatprep.subr.mxu0 0.0
    %479 = vmatpush2.msra.mxu0 0.0
    %480 = vmatprep.subr.mxu0 0.0
    %481 = vmatpush2.msra.mxu0 0.0
    %482 = vmatprep.subr.mxu0 0.0
    %483 = vmatpush2.msra.mxu0 0.0
    %484 = vmatprep.subr.mxu0 0.0
    %485 = vmatpush2.msra.mxu0 0.0
    %486 = vmatprep.subr.mxu0 0.0
    %487 = vmatpush2.msra.mxu0 0.0
    %488 = vmatprep.subr.mxu0 0.0
    %489 = vmatpush2.msra.mxu0 0.0
    %490 = vmatprep.subr.mxu0 0.0
    %491 = vmatpush2.msra.mxu0 0.0
    %492 = vmatprep.subr.mxu0 0.0
    %493 = vmatpush2.msra.mxu0 0.0
    %494 = vmatprep.subr.mxu0 0.0
    %495 = vmatpush2.msra.mxu0 0.0
    %496 = vmatprep.subr.mxu0 0.0
    %497 = vmatpush2.msra.mxu0 0.0
    %498 = vmatprep.subr.mxu0 0.0
    %499 = vmatpush2.msra.mxu0 0.0
    %500 = vmatprep.subr.mxu0 0.0
    %501 = vmatpush2.msra.mxu0 0.0
    %502 = vmatprep.subr.mxu0 0.0
    %503 = vmatpush2.msra.mxu0 0.0
    %504 = vmatprep.subr.mxu0 0.0
    %505 = vmatpush2.msra.mxu0 0.0
    %506 = vmatprep.subr.mxu0 0.0
    %507 = vmatpush2.msra.mxu0 0.0
    %508 = vmatprep.subr.mxu0 0.0
    %509 = vmatpush2.msra.mxu0 0.0
    %510 = vmatprep.mubr.f32.mxu0 0.0
    %v511 = vand.u32 %v52, 4294901760
    %512 = vmatmul.mubr.f32.gmra.mxu0 %v511
    %v513 = vpop.f32.mrf.mxu0
    %v514 = vadd.f32 %v441, %v513
    %v515 = vpop.f32.mrf.mxu0
    %516 = vdwg.mxu0
    %517 = vst [vmem:[%s3] sm:$0xff] %v514
    %518 = vst [vmem:[%s3 + $0x8] sm:$0xff] 0.0
    %519 = vst [vmem:[%s3 + $0x10] sm:$0xff] 0.0
    %520 = vst [vmem:[%s3 + $0x18] sm:$0xff] 0.0
    %521 = vst [vmem:[%s3 + $0x20] sm:$0xff] 0.0
    %522 = vst [vmem:[%s3 + $0x28] sm:$0xff] 0.0
    %523 = vst [vmem:[%s3 + $0x30] sm:$0xff] 0.0
    %524 = vst [vmem:[%s3 + $0x38] sm:$0xff] 0.0
    // Predicated region
    $region22: #{au_encoder_forward.1} parent=1 // pred_check
      _
    $region23: #{au_encoder_forward.1} parent=1 // pred_check_branch
      %526 = sbr.rel (0) target = $region25
    $region24: #{au_encoder_forward.1} parent=1 // pred_region
      _
    $region25: #{au_encoder_forward.1} parent=1 // pred_fallthru
      _
    // Predicated region
    $region26: #{au_encoder_forward.1} parent=1 // pred_check
      _
    $region27: #{au_encoder_forward.1} parent=1 // pred_check_branch
      %528 = sbr.rel (0) target = $region29
    $region28: #{au_encoder_forward.1} parent=1 // pred_region
      _
    $region29: #{au_encoder_forward.1} parent=1 // pred_fallthru
      _
    %529 = vsyncpa [#allocation3], 1
    %530 = vsyncpa [#allocation5], 1

</llo_original>
